<compile_context>
chip_gen: v7x
topology: tpu7x:2x2x1
jax: 0.10.0
libtpu: 0.0.40
codegen_flags: <defaults>
</compile_context>

<pallas_src>
import functools

import jax
import jax.numpy as jnp
from jax.experimental import pallas as pl
from jax.experimental.pallas import tpu as pltpu

SELU_ALPHA = 1.6732632423543772
SELU_SCALE = 1.0507009873554805


def _agg_selu_kernel(a_ref, xw_ref, out_ref, acc_ref):
    """SELU(A_norm @ XW) for one (tm, F) row tile; contraction streamed on axis 1."""
    kk = pl.program_id(1)

    @pl.when(kk == 0)
    def _():
        acc_ref[...] = jnp.zeros_like(acc_ref)

    acc_ref[...] += jnp.dot(a_ref[...], xw_ref[...],
                            preferred_element_type=jnp.float32)

    @pl.when(kk == pl.num_programs(1) - 1)
    def _():
        h = acc_ref[...]
        neg = SELU_ALPHA * (jnp.exp(jnp.minimum(h, 0.0)) - 1.0)
        out_ref[...] = (SELU_SCALE * jnp.where(h > 0.0, h, neg)
                        ).astype(out_ref.dtype)


def _round_up(a, b):
    return ((a + b - 1) // b) * b


def _vmem_budget_bytes():
    # Generation-aware cap: v7x has 64 MiB VMEM per TensorCore, v5e/v6e 128 MiB.
    try:
        cap = int(pltpu.get_tpu_info().vmem_capacity_bytes)
    except Exception:
        cap = 128 << 20
    return (48 << 20) if cap <= (64 << 20) else (100 << 20)


def _choose_tiles(n, f, row_tile, budget):
    """Pick (tm, padded M, m_tiles, tk, padded K) for the (N,N)@(N,F) aggregation."""
    # Row tile: multiple of 8; pad N rather than falling back to tile == N.
    tm = max(8, min(_round_up(row_tile, 8), _round_up(n, 8)))
    n_pad_m = _round_up(n, tm)
    if n_pad_m // tm < 2 and n_pad_m > 8:
        # Ensure >= 2 row tiles so the "parallel" axis can split across 2 TCs.
        tm = max(8, _round_up((n_pad_m + 1) // 2, 8))
        n_pad_m = _round_up(n, tm)
    m_tiles = n_pad_m // tm
    if m_tiles > 1 and m_tiles % 2 == 1:
        # Even tile count avoids a straggler core on v7x (at most one pad tile).
        m_tiles += 1
        n_pad_m = m_tiles * tm

    # Contraction tile: single K block when the double-buffered blocks fit well
    # within the budget; otherwise a power-of-two multiple of 128.
    def blocks_bytes(tk):
        return (2 * tm * tk * 2      # A tile, bf16, double-buffered
                + 2 * tk * f * 2     # XW tile, bf16, double-buffered
                + 2 * tm * f * 4     # output tile, f32, double-buffered
                + tm * f * 4)        # f32 accumulator scratch

    if blocks_bytes(n) <= budget // 2:
        tk = n
        n_pad_k = n                  # block == full array dim -> no (8,128) issue
    else:
        tk = 4096
        while tk > 128 and blocks_bytes(tk) > budget // 2:
            tk //= 2
        n_pad_k = _round_up(n, tk)
    return tm, n_pad_m, m_tiles, tk, n_pad_k


@functools.partial(jax.jit, static_argnames=("node_count", "row_tile"))
def recurrent_gcn_forward(params, x, edge_index, edge_weight, node_count,
                          row_tile=512):
    """Full RecurrentGCN forward.  Returns (h, None) like the PyTorch module."""
    N = node_count
    F = x.shape[1]
    x = x.astype(jnp.float32)
    ew = edge_weight.astype(jnp.float32)

    # ---------- glue: TopKPooling (score + data-dependent top-k select) ----------
    p = params["topk_p"]                                    # (F,)
    score = jnp.tanh(x @ p / jnp.linalg.norm(p))
    k_pool = min(F, N)                                      # guard small graphs
    top_vals, perm = jax.lax.top_k(score, k_pool)
    x_tilde = x[perm] * top_vals[:, None]                   # (k_pool, F)
    if k_pool < F:
        # TODO(synk): PyTorch reference assumes F <= N; zero-pad pooled rows otherwise.
        x_tilde = jnp.pad(x_tilde, ((0, F - k_pool), (0, 0)))

    # ---------- GRU hoisted to the wrapper (tiny FxF ops, grid-invariant) ----------
    h0 = params["init_weight"].astype(jnp.float32)          # (F, F) hidden = GCN weight
    gi = x_tilde @ params["gru_w_ih"].T + params["gru_b_ih"]   # (F, 3F)
    gh = h0 @ params["gru_w_hh"].T + params["gru_b_hh"]        # (F, 3F)
    r = jax.nn.sigmoid(gi[:, 0:F] + gh[:, 0:F])
    z = jax.nn.sigmoid(gi[:, F:2 * F] + gh[:, F:2 * F])
    n_g = jnp.tanh(gi[:, 2 * F:3 * F] + r * gh[:, 2 * F:3 * F])
    w_new = (1.0 - z) * n_g + z * h0                        # (F, F)

    # ---------- tiling / budgets ----------
    budget = _vmem_budget_bytes()
    tm, n_pad_m, m_tiles, tk, n_pad_k = _choose_tiles(N, F, row_tile, budget)
    k_tiles = n_pad_k // tk

    # ---------- fully normalized adjacency built in ONE scatter pass ----------
    # degrees from the edge list (self-loop weight 2 == "improved"), symmetric
    # normalization folded into the scattered values, single f32->bf16 cast.
    src, tgt = edge_index[0], edge_index[1]
    loops = jnp.arange(N, dtype=src.dtype)
    src_all = jnp.concatenate([src, loops])
    tgt_all = jnp.concatenate([tgt, loops])
    w_all = jnp.concatenate([ew, jnp.full((N,), 2.0, jnp.float32)])
    deg = jnp.zeros((N,), jnp.float32).at[tgt_all].add(w_all)
    dinv = jnp.where(deg > 0.0, jax.lax.rsqrt(deg), 0.0)
    vals = w_all * dinv[tgt_all] * dinv[src_all]
    a_norm = (jnp.zeros((n_pad_m, n_pad_k), jnp.float32)
              .at[tgt_all, src_all].add(vals)).astype(jnp.bfloat16)

    # ---------- reassociated projection: A_norm @ (X @ W_new) ----------
    xw = (x @ w_new).astype(jnp.bfloat16)                   # (N, F)
    if n_pad_k > N:
        xw = jnp.pad(xw, ((0, n_pad_k - N), (0, 0)))

    flops = 2 * n_pad_m * n_pad_k * F
    transcendentals = n_pad_m * F
    bytes_accessed = (n_pad_m * n_pad_k * 2            # A stream
                      + m_tiles * n_pad_k * F * 2      # xw re-read per row tile
                      + n_pad_m * F * 4)               # output
    block_bytes = (2 * tm * tk * 2 + 2 * tk * F * 2 + 2 * tm * F * 4
                   + tm * F * 4)
    vmem_limit = min(budget, max(16 << 20, 4 * block_bytes))

    selu_out = pl.pallas_call(
        _agg_selu_kernel,
        out_shape=jax.ShapeDtypeStruct((n_pad_m, F), jnp.float32),
        grid_spec=pltpu.PrefetchScalarGridSpec(
            num_scalar_prefetch=0,
            grid=(m_tiles, k_tiles),
            in_specs=[
                pl.BlockSpec((tm, tk), lambda i, kk: (i, kk)),   # A_norm tile (bf16)
                pl.BlockSpec((tk, F), lambda i, kk: (kk, 0)),    # XW tile     (bf16)
            ],
            out_specs=pl.BlockSpec((tm, F), lambda i, kk: (i, 0)),
            scratch_shapes=[pltpu.VMEM((tm, F), jnp.float32)],
        ),
        compiler_params=pltpu.CompilerParams(
            dimension_semantics=("parallel", "arbitrary"),
            vmem_limit_bytes=int(vmem_limit)),
        cost_estimate=pl.CostEstimate(
            flops=int(flops),
            transcendentals=int(transcendentals),
            bytes_accessed=int(bytes_accessed)),
    )(a_norm, xw)

    # ---------- trivial Linear(F, 1) in the wrapper ----------
    h_out = selu_out[:N] @ params["lin_w"].T + params["lin_b"][None, :]   # (N, 1)
    return h_out, None


def init_params(key, node_count, node_features):
    F = node_features
    ks = jax.random.split(key, 7)
    scale = 1.0 / jnp.sqrt(F)
    return {
        "topk_p": jax.random.uniform(ks[0], (F,), jnp.float32, -scale, scale),
        "init_weight": jax.random.uniform(ks[1], (F, F), jnp.float32, -scale, scale),
        "gru_w_ih": jax.random.uniform(ks[2], (3 * F, F), jnp.float32, -scale, scale),
        "gru_w_hh": jax.random.uniform(ks[3], (3 * F, F), jnp.float32, -scale, scale),
        "gru_b_ih": jax.random.uniform(ks[4], (3 * F,), jnp.float32, -scale, scale),
        "gru_b_hh": jax.random.uniform(ks[5], (3 * F,), jnp.float32, -scale, scale),
        "lin_w": jax.random.uniform(ks[6], (1, F), jnp.float32, -scale, scale),
        "lin_b": jnp.zeros((1,), jnp.float32),
    }


def _reference_forward(params, x, edge_index, edge_weight, N):
    """Pure-JAX f32 reference of the same forward pass (for a tolerance check)."""
    F = x.shape[1]
    p = params["topk_p"]
    score = jnp.tanh(x @ p / jnp.linalg.norm(p))
    top_vals, perm = jax.lax.top_k(score, min(F, N))
    x_tilde = x[perm] * top_vals[:, None]
    h0 = params["init_weight"]
    gi = x_tilde @ params["gru_w_ih"].T + params["gru_b_ih"]
    gh = h0 @ params["gru_w_hh"].T + params["gru_b_hh"]
    r = jax.nn.sigmoid(gi[:, :F] + gh[:, :F])
    z = jax.nn.sigmoid(gi[:, F:2 * F] + gh[:, F:2 * F])
    n_g = jnp.tanh(gi[:, 2 * F:] + r * gh[:, 2 * F:])
    w_new = (1.0 - z) * n_g + z * h0
    src, tgt = edge_index[0], edge_index[1]
    A = jnp.zeros((N, N), jnp.float32).at[tgt, src].add(edge_weight)
    A = A + 2.0 * jnp.eye(N, dtype=jnp.float32)
    deg = A.sum(axis=1)
    dinv = jnp.where(deg > 0.0, jax.lax.rsqrt(deg), 0.0)
    a_norm = dinv[:, None] * A * dinv[None, :]
    h = jax.nn.selu(a_norm @ (x @ w_new))
    return h @ params["lin_w"].T + params["lin_b"][None, :]


if __name__ == "__main__":
    NODE_COUNT = 64
    NODE_FEATURES = 16
    NUM_EDGES = 256

    key = jax.random.PRNGKey(0)
    k_x, k_src, k_tgt, k_w, k_p = jax.random.split(key, 5)

    x = jax.random.normal(k_x, (NODE_COUNT, NODE_FEATURES), jnp.float32)
    src = jax.random.randint(k_src, (NUM_EDGES,), 0, NODE_COUNT, jnp.int32)
    tgt = jax.random.randint(k_tgt, (NUM_EDGES,), 0, NODE_COUNT, jnp.int32)
    edge_index = jnp.stack([src, tgt], axis=0)
    edge_weight = jax.random.uniform(k_w, (NUM_EDGES,), jnp.float32, 0.1, 1.0)

    params = init_params(k_p, NODE_COUNT, NODE_FEATURES)

    # Default row_tile=512: the tile chooser pads/splits down to tm=32 so the
    # parallel row-tiled path (grid=(2, 1)) is exercised on this small graph.
    h, _ = recurrent_gcn_forward(params, x, edge_index, edge_weight,
                                 node_count=NODE_COUNT)
    jax.block_until_ready(h)

    assert h.shape == (NODE_COUNT, 1) and h.dtype == jnp.float32
    assert bool(jnp.all(jnp.isfinite(h)))

    # Loose-tolerance check against a pure-JAX f32 reference (kernel uses bf16
    # operands with f32 accumulation for the dense aggregation).
    h_ref = _reference_forward(params, x, edge_index, edge_weight, NODE_COUNT)
    assert bool(jnp.all(jnp.abs(h - h_ref) <= 5e-2 + 5e-2 * jnp.abs(h_ref)))

    print("KERNEL_OK")
</pallas_src>

<mosaic_0001>
module attributes {stable_mosaic.version = 11 : i64} {
  func.func private @main(%arg0: i32) attributes {dimension_semantics = [#tpu.dimension_semantics<core_parallel>], iteration_bounds = array<i64: 2>, tpu.core_type = #tpu.core_type<sc_scalar_subcore>, window_params = []} {
    return
  }
}

module attributes {stable_mosaic.version = 11 : i64} {
  func.func private @main(%arg0: i32) attributes {dimension_semantics = [#tpu.dimension_semantics<core_parallel>], iteration_bounds = array<i64: 2>, tpu.core_type = #tpu.core_type<sc_scalar_subcore>, window_params = []} {
    return
  }
}

module attributes {stable_mosaic.version = 11 : i64} {
  func.func @_agg_selu_kernel(%arg0: i32, %arg1: i32, %arg2: memref<32x64xbf16, #tpu.memory_space<vmem>>, %arg3: memref<64x16xbf16, #tpu.memory_space<vmem>>, %arg4: memref<32x16xf32, #tpu.memory_space<vmem>>, %arg5: memref<32x16xf32, #tpu.memory_space<vmem>>) attributes {dimension_semantics = [#tpu.dimension_semantics<parallel>, #tpu.dimension_semantics<arbitrary>], iteration_bounds = array<i64: 2, 1>, scalar_prefetch = 0 : i64, scratch_operands = 1 : i64, tpu.core_type = #tpu.core_type<tc>, window_params = [{transform_indices = @transform_0, window_bounds = array<i64: 32, 64>}, {transform_indices = @transform_1, window_bounds = array<i64: 64, 16>}, {transform_indices = @transform_2, window_bounds = array<i64: 32, 16>}]} {
    %c0_i32 = arith.constant 0 : i32
    %0 = arith.cmpi eq, %arg1, %c0_i32 : i32
    %1 = arith.extui %0 : i1 to i32
    %c0_i32_0 = arith.constant 0 : i32
    %2 = arith.cmpi ne, %1, %c0_i32_0 : i32
    scf.if %2 {
      %cst_10 = arith.constant 0.000000e+00 : f32
      %12 = vector.broadcast %cst_10 : f32 to vector<32x16xf32>
      %c0_11 = arith.constant 0 : index
      %c0_12 = arith.constant 0 : index
      %13 = vector.load %arg5[%c0_11, %c0_12] : memref<32x16xf32, #tpu.memory_space<vmem>>, vector<32x16xf32>
      tpu.vector_store %arg5[%c0_11, %c0_12], %12 {strides = array<i32>} : memref<32x16xf32, #tpu.memory_space<vmem>>, vector<32x16xf32>,
    } else {
    }
    %c0 = arith.constant 0 : index
    %c0_1 = arith.constant 0 : index
    %3 = vector.load %arg5[%c0, %c0_1] : memref<32x16xf32, #tpu.memory_space<vmem>>, vector<32x16xf32>
    %c0_2 = arith.constant 0 : index
    %c0_3 = arith.constant 0 : index
    %4 = vector.load %arg2[%c0_2, %c0_3] : memref<32x64xbf16, #tpu.memory_space<vmem>>, vector<32x64xbf16>
    %c0_4 = arith.constant 0 : index
    %c0_5 = arith.constant 0 : index
    %5 = vector.load %arg3[%c0_4, %c0_5] : memref<64x16xbf16, #tpu.memory_space<vmem>>, vector<64x16xbf16>
    %cst = arith.constant dense<0.000000e+00> : vector<32x16xf32>
    %6 = tpu.matmul %4, %5, %cst {dimension_numbers = #tpu.dot_dimension_numbers<[1], [0], [0], [1], [0, 0, 1, 1], [], []>} : vector<32x64xbf16>, vector<64x16xbf16>, vector<32x16xf32> -> vector<32x16xf32>
    %7 = arith.addf %3, %6 : vector<32x16xf32>
    %c0_6 = arith.constant 0 : index
    %c0_7 = arith.constant 0 : index
    %8 = vector.load %arg5[%c0_6, %c0_7] : memref<32x16xf32, #tpu.memory_space<vmem>>, vector<32x16xf32>
    tpu.vector_store %arg5[%c0_6, %c0_7], %7 {strides = array<i32>} : memref<32x16xf32, #tpu.memory_space<vmem>>, vector<32x16xf32>,
    %c0_i32_8 = arith.constant 0 : i32
    %9 = arith.cmpi eq, %arg1, %c0_i32_8 : i32
    %10 = arith.extui %9 : i1 to i32
    %c0_i32_9 = arith.constant 0 : i32
    %11 = arith.cmpi ne, %10, %c0_i32_9 : i32
    scf.if %11 {
      %c0_10 = arith.constant 0 : index
      %c0_11 = arith.constant 0 : index
      %12 = vector.load %arg5[%c0_10, %c0_11] : memref<32x16xf32, #tpu.memory_space<vmem>>, vector<32x16xf32>
      %cst_12 = arith.constant 0.000000e+00 : f32
      %13 = vector.broadcast %cst_12 : f32 to vector<32x16xf32>
      %14 = arith.minimumf %12, %13 : vector<32x16xf32>
      %15 = math.exp %14 : vector<32x16xf32>
      %cst_13 = arith.constant 1.000000e+00 : f32
      %16 = vector.broadcast %cst_13 : f32 to vector<32x16xf32>
      %17 = arith.subf %15, %16 : vector<32x16xf32>
      %cst_14 = arith.constant 1.67326319 : f32
      %18 = vector.broadcast %cst_14 : f32 to vector<32x16xf32>
      %19 = arith.mulf %18, %17 : vector<32x16xf32>
      %cst_15 = arith.constant 0.000000e+00 : f32
      %20 = vector.broadcast %cst_15 : f32 to vector<32x16xf32>
      %21 = arith.cmpf ogt, %12, %20 : vector<32x16xf32>
      %22 = arith.select %21, %12, %19 : vector<32x16xi1>, vector<32x16xf32>
      %cst_16 = arith.constant 1.05070102 : f32
      %23 = vector.broadcast %cst_16 : f32 to vector<32x16xf32>
      %24 = arith.mulf %23, %22 : vector<32x16xf32>
      %c0_17 = arith.constant 0 : index
      %c0_18 = arith.constant 0 : index
      %25 = vector.load %arg4[%c0_17, %c0_18] : memref<32x16xf32, #tpu.memory_space<vmem>>, vector<32x16xf32>
      tpu.vector_store %arg4[%c0_17, %c0_18], %24 {strides = array<i32>} : memref<32x16xf32, #tpu.memory_space<vmem>>, vector<32x16xf32>,
    } else {
    }
    return
  }
  func.func @transform_0(%arg0: i32, %arg1: i32) -> (i32, i32) {
    %c0_i32 = arith.constant 0 : i32
    return %arg0, %arg1 : i32, i32
  }
  func.func @transform_1(%arg0: i32, %arg1: i32) -> (i32, i32) {
    %c0_i32 = arith.constant 0 : i32
    %c0_i32_0 = arith.constant 0 : i32
    return %arg1, %c0_i32 : i32, i32
  }
  func.func @transform_2(%arg0: i32, %arg1: i32) -> (i32, i32) {
    %c0_i32 = arith.constant 0 : i32
    %c0_i32_0 = arith.constant 0 : i32
    return %arg0, %c0_i32 : i32, i32
  }
}

</mosaic_0001>

<llo_original>
// kernel: recurrent_gcn_forward.1
$region0: #{recurrent_gcn_forward.1}
  #allocation0 [shape = 'u32[]', space=smem, size = 0x4, offset = 0x4, fixed_abs, tag = 'smem constant byte address 0x4 - core index']
  #allocation1 [shape = 'u32[144,128]{1,0:T(1,128)}', space=vmem, size = 0x12000, scoped, tag = 'internal scratch']
  #allocation2 [shape = 'f32[32,16]{1,0:T(8,128)}', space=vmem, size = 0x4000, scoped, tag = 'scratch operand']
  %s0 = inlined_call_operand.vmem [shape: bf16[64,64], index: 0, kind: input, shape index: {}]
  %s1 = inlined_call_operand.vmem [shape: bf16[64,16], index: 1, kind: input, shape index: {}]
  %s2 = inlined_call_operand.vmem [shape: f32[64,16], index: 2, kind: output, shape index: {}]
  %s3 = sld [smem:[#allocation0]]
  $region49: #{recurrent_gcn_forward.1} parent=0
    _
  %s5 = ssub.s32 1, %s3
  %s6 = scalar_select 0, %s5, %s3
  loop: start=0, step=1, limit=4
  $region2: #{recurrent_gcn_forward.1} parent=0 // loop_pre_header
    _
  $region3: #{recurrent_gcn_forward.1} parent=0 // loop_header
    %s8 = sphi 0, %s12
    %p9 = scmp.ge.s32.totalorder %s8, 4
    %s15 = sphi 0, %s27
    %s16 = sphi 0, %s23
    %s17 = sphi 0, %s15
    %s18 = sphi 0, %s16
    %s19 = sphi 0, %s17
    %s20 = sphi 0, %s18
    %s32 = sphi 0, %s34
    %s35 = sphi 0, %s32
    %s36 = sphi 0, %s35
    %s52 = sphi 0, %s36
    %s58 = sphi 0, %s60
    %s61 = sphi 0, %s58
    %s62 = sphi 0, %s61
    %s78 = sphi 0, %s62
    %s84 = sphi 0, %s86
    %s87 = sphi 0, %s84
    %s88 = sphi 0, %s87
    %s104 = sphi 0, %s88
  $region4: #{recurrent_gcn_forward.1} parent=0 // loop_header_branch
    %11 = sbr.rel (%p9) target = $region8
  $region5: #{recurrent_gcn_forward.1} parent=0 // loop_body
    %s13 = ssub.s32 %s8, 1
    %s14 = ssub.s32 %s8, 2
    %s21 = sadd.s32 1, %s16
    %p22 = scmp.ge.s32.totalorder %s21, 1
    %s23 = scalar_select %p22, 0, %s21
    %s24 = sadd.s32 1, %s15
    %s25 = scalar_select %p22, %s24, %s15
    %p26 = scmp.ge.s32.totalorder %s25, 2
    %s27 = scalar_select %p26, 0, %s25
    %s28 = ssub.s32 %s15, %s27
    %s29 = ssub.s32 %s16, %s23
    %s30 = sor.u32 %s28, %s29
    %p31 = scmp.eq.s32.totalorder %s30, 0
    %s33 = sadd.s32 %s32, 1
    %s34 = scalar_select %p31, %s32, %s33
    %p37 = pneg %p31
    %p38 = scmp.eq.s32.totalorder %s8, 1
    %p39 = por %p37, %p38
    %p40 = scmp.ne.s32.totalorder %s32, %s35
    %p41 = scmp.eq.s32.totalorder %s8, 0
    %p42 = por %p40, %p41
    %p43 = scmp.ne.s32.totalorder %s32, %s35
    %p44 = scmp.eq.s32.totalorder %s13, 1
    %p45 = por %p43, %p44
    %p46 = scmp.ne.s32.totalorder %s35, %s36
    %p47 = scmp.eq.s32.totalorder %s13, 0
    %p48 = por %p46, %p47
    %p49 = scmp.ne.s32.totalorder %s35, %s36
    %p50 = scmp.eq.s32.totalorder %s14, 1
    %p51 = por %p49, %p50
    %p53 = scmp.ne.s32.totalorder %s36, %s52
    %p54 = scmp.eq.s32.totalorder %s14, 0
    %p55 = por %p53, %p54
    %s56 = ssub.s32 %s16, %s23
    %p57 = scmp.eq.s32.totalorder %s56, 0
    %s59 = sadd.s32 %s58, 1
    %s60 = scalar_select %p57, %s58, %s59
    %p63 = pneg %p57
    %p64 = scmp.eq.s32.totalorder %s8, 1
    %p65 = por %p63, %p64
    %p66 = scmp.ne.s32.totalorder %s58, %s61
    %p67 = scmp.eq.s32.totalorder %s8, 0
    %p68 = por %p66, %p67
    %p69 = scmp.ne.s32.totalorder %s58, %s61
    %p70 = scmp.eq.s32.totalorder %s13, 1
    %p71 = por %p69, %p70
    %p72 = scmp.ne.s32.totalorder %s61, %s62
    %p73 = scmp.eq.s32.totalorder %s13, 0
    %p74 = por %p72, %p73
    %p75 = scmp.ne.s32.totalorder %s61, %s62
    %p76 = scmp.eq.s32.totalorder %s14, 1
    %p77 = por %p75, %p76
    %p79 = scmp.ne.s32.totalorder %s62, %s78
    %p80 = scmp.eq.s32.totalorder %s14, 0
    %p81 = por %p79, %p80
    %s82 = ssub.s32 %s15, %s27
    %p83 = scmp.eq.s32.totalorder %s82, 0
    %s85 = sadd.s32 %s84, 1
    %s86 = scalar_select %p83, %s84, %s85
    %p89 = pneg %p83
    %p90 = scmp.eq.s32.totalorder %s8, 1
    %p91 = por %p89, %p90
    %p92 = scmp.ne.s32.totalorder %s84, %s87
    %p93 = scmp.eq.s32.totalorder %s8, 0
    %p94 = por %p92, %p93
    %p95 = scmp.ne.s32.totalorder %s84, %s87
    %p96 = scmp.eq.s32.totalorder %s13, 1
    %p97 = por %p95, %p96
    %p98 = scmp.ne.s32.totalorder %s87, %s88
    %p99 = scmp.eq.s32.totalorder %s13, 0
    %p100 = por %p98, %p99
    %p101 = scmp.ne.s32.totalorder %s87, %s88
    %p102 = scmp.eq.s32.totalorder %s14, 1
    %p103 = por %p101, %p102
    %p105 = scmp.ne.s32.totalorder %s88, %s104
    %p106 = scmp.eq.s32.totalorder %s14, 0
    %p107 = por %p105, %p106
    %p108 = scmp.le.s32.totalorder 1, %s8
    %p109 = scmp.lt.s32.totalorder %s8, 3
    %p110 = pnand %p108, %p109
    %p111 = pneg %p110
    // Predicated region
    $region9: #{recurrent_gcn_forward.1} parent=5 // pred_check
      _
    $region10: #{recurrent_gcn_forward.1} parent=5 // pred_check_branch
      %113 = sbr.rel (%p110) target = $region12
    $region11: #{recurrent_gcn_forward.1} parent=5 // pred_region
      %s114 = ssub.s32 %s8, 1
      // Predicated region
      $region13: #{recurrent_gcn_forward.1} parent=11 // pred_check
        %p115 = pneg %p74
      $region14: #{recurrent_gcn_forward.1} parent=11 // pred_check_branch
        %117 = sbr.rel (%p115) target = $region16
      $region15: #{recurrent_gcn_forward.1} parent=11 // pred_region
        %s118 = smul.u32 8, %s18
        %p119 = scmp.lt.s32.totalorder %s118, 7
        %s120 = scalar_select %p119, %s118, 7
        %s121 = smul.addr %s120, 4
        %s122 = scalar_lea.vmem %s1, %s121
        %s123 = smul.u32 8, %s18
      $region16: #{recurrent_gcn_forward.1} parent=11 // pred_fallthru
        _
    $region12: #{recurrent_gcn_forward.1} parent=5 // pred_fallthru
      _
    %p124 = scmp.lt.s32.totalorder %s8, 2
    // Predicated region
    $region17: #{recurrent_gcn_forward.1} parent=5 // pred_check
      %p125 = pneg %p124
    $region18: #{recurrent_gcn_forward.1} parent=5 // pred_check_branch
      %127 = sbr.rel (%p125) target = $region20
    $region19: #{recurrent_gcn_forward.1} parent=5 // pred_region
      // Predicated region
      $region21: #{recurrent_gcn_forward.1} parent=19 // pred_check
        %p128 = pneg %p42
      $region22: #{recurrent_gcn_forward.1} parent=19 // pred_check_branch
        %130 = sbr.rel (%p128) target = $region24
      $region23: #{recurrent_gcn_forward.1} parent=19 // pred_region
        %s131 = smul.u32 4, %s15
        %p132 = scmp.lt.s32.totalorder %s131, 7
        %s133 = scalar_select %p132, %s131, 7
        %p134 = scmp.lt.s32.totalorder %s16, 0
        %s135 = scalar_select %p134, %s16, 0
        %s136 = sadd.s32 %s135, %s133
        %s137 = smul.addr %s136, 4
        %s138 = scalar_lea.vmem %s0, %s137
        %s139 = smul.u32 4, %s15
      $region24: #{recurrent_gcn_forward.1} parent=19 // pred_fallthru
        _
    $region20: #{recurrent_gcn_forward.1} parent=5 // pred_fallthru
      _
    %p140 = scmp.le.s32.totalorder 1, %s8
    %p141 = scmp.lt.s32.totalorder %s8, 3
    %p142 = pnand %p140, %p141
    %p143 = pneg %p142
    // Predicated region
    $region25: #{recurrent_gcn_forward.1} parent=5 // pred_check
      _
    $region26: #{recurrent_gcn_forward.1} parent=5 // pred_check_branch
      %145 = sbr.rel (%p142) target = $region28
    $region27: #{recurrent_gcn_forward.1} parent=5 // pred_region
      %s146 = ssub.s32 %s8, 1
      %s147 = smul.u32 4, %s17
      %p148 = scmp.lt.s32.totalorder %s147, 7
      %s149 = scalar_select %p148, %s147, 7
      %p150 = scmp.lt.s32.totalorder %s18, 0
      %s151 = scalar_select %p150, %s18, 0
      %s152 = sadd.s32 %s151, %s149
      %s153 = smul.addr %s152, 4
      %s154 = scalar_lea.vmem %s0, %s153
      %p155 = pneg %p48
      %p156 = pneg %p45
      %s157 = smul.u32 8, %s18
      %p158 = scmp.lt.s32.totalorder %s157, 7
      %s159 = scalar_select %p158, %s157, 7
      %s160 = smul.addr %s159, 4
      %s161 = scalar_lea.vmem %s1, %s160
      %p162 = pneg %p74
      %p163 = pneg %p71
      %p164 = pneg %p100
      %p165 = pneg %p97
      %s166 = smul.u32 4, %s17
      %p167 = scmp.lt.s32.totalorder %s166, 7
      %s168 = scalar_select %p167, %s166, 7
      %s169 = smul.addr %s168, 8
      %s170 = scalar_lea.vmem %s2, %s169
      %s171 = smul.u32 4, %s17
      %p172 = scmp.lt.s32.totalorder %s171, 7
      %s173 = scalar_select %p172, %s171, 7
      %p174 = scmp.lt.s32.totalorder %s18, 0
      %s175 = scalar_select %p174, %s18, 0
      %s176 = sadd.s32 %s175, %s173
      %s177 = smul.addr %s176, 4
      %s178 = scalar_lea.vmem %s0, %s177
      %s179 = smul.u32 4, %s17
      %s180 = smul.u32 8, %s18
      %p181 = scmp.lt.s32.totalorder %s180, 7
      %s182 = scalar_select %p181, %s180, 7
      %s183 = smul.addr %s182, 4
      %s184 = scalar_lea.vmem %s1, %s183
      %s185 = smul.u32 8, %s18
      %s186 = smul.u32 4, %s17
      %p187 = scmp.lt.s32.totalorder %s186, 7
      %s188 = scalar_select %p187, %s186, 7
      %s189 = smul.addr %s188, 8
      %s190 = scalar_lea.vmem %s2, %s189
      %s191 = smul.u32 4, %s17
      %p193 = scmp.eq.s32.totalorder %s18, 0
      // Predicated region
      $region29: #{recurrent_gcn_forward.1} parent=27 // pred_check
        %p194 = pneg %p193
      $region30: #{recurrent_gcn_forward.1} parent=27 // pred_check_branch
        %196 = sbr.rel (%p194) target = $region32
      $region31: #{recurrent_gcn_forward.1} parent=27 // pred_region
        %vm197 = vcmask 130048
        %198 = vst.msk [vmem:[#allocation2] sm:$0xff] %vm197, 0.0
        %199 = vst.msk [vmem:[#allocation2 + $0x8] sm:$0xff] %vm197, 0.0
        %200 = vst.msk [vmem:[#allocation2 + $0x10] sm:$0xff] %vm197, 0.0
        %201 = vst.msk [vmem:[#allocation2 + $0x18] sm:$0xff] %vm197, 0.0
      $region32: #{recurrent_gcn_forward.1} parent=27 // pred_fallthru
        _
      %v202 = vld [vmem:[#allocation2] sm:$0xff]
      %v203 = vld [vmem:[#allocation2 + $0x8] sm:$0xff]
      %v204 = vld [vmem:[#allocation2 + $0x10] sm:$0xff]
      %v205 = vld [vmem:[#allocation2 + $0x18] sm:$0xff]
      %v206 = vld [vmem:[%s178] sm:$0xf]
      %v207 = vld [vmem:[%s178 + $0x4] sm:$0xf]
      %v208 = vld [vmem:[%s178 + $0x8] sm:$0xf]
      %v209 = vld [vmem:[%s178 + $0xc] sm:$0xf]
      %v210 = vld [vmem:[%s184] sm:$0xf]
      %v211 = vld [vmem:[%s184 + $0x4] sm:$0xf]
      %v212 = vld [vmem:[%s184 + $0x8] sm:$0xf]
      %v213 = vld [vmem:[%s184 + $0xc] sm:$0xf]
      %v214 = vld [vmem:[%s184 + $0x10] sm:$0xf]
      %v215 = vld [vmem:[%s184 + $0x14] sm:$0xf]
      %v216 = vld [vmem:[%s184 + $0x18] sm:$0xf]
      %v217 = vld [vmem:[%s184 + $0x1c] sm:$0xf]
      %v222 = vunpack.c.l.b16 %v206
      %v223 = vunpack.c.l.b16 %v207
      %v224 = vunpack.c.l.b16 %v208
      %v225 = vunpack.c.l.b16 %v209
      %v226 = vpack.c.b16 %v223, %v222
      %v227 = vpack.c.b16 %v225, %v224
      %v236 = vunpack.c.l.b16 %v210
      %v237 = vunpack.c.l.b16 %v211
      %v238 = vunpack.c.l.b16 %v212
      %v239 = vunpack.c.l.b16 %v213
      %v240 = vunpack.c.l.b16 %v214
      %v241 = vunpack.c.l.b16 %v215
      %v242 = vunpack.c.l.b16 %v216
      %v243 = vunpack.c.l.b16 %v217
      %v244 = vpack.c.b16 %v237, %v236
      %v245 = vpack.c.b16 %v239, %v238
      %v246 = vpack.c.b16 %v241, %v240
      %v247 = vpack.c.b16 %v243, %v242
      %vm252 = vcmask 523264
      %v254 = vsel %vm252, %v226, 0
      %v257 = vsel %vm252, %v227, 0
      %259 = vmatprep.subr.bf16.mxu0 0
      %260 = vmatpush1.bf16.msra.mxu0 %v244
      %261 = vmatprep.subr.bf16.mxu0 0
      %262 = vmatpush1.bf16.msra.mxu0 %v245
      %263 = vmatprep.subr.bf16.mxu0 0
      %264 = vmatpush1.bf16.msra.mxu0 %v246
      %265 = vmatprep.subr.bf16.mxu0 0
      %266 = vmatpush1.bf16.msra.mxu0 %v247
      %267 = vmatprep.subr.bf16.mxu0 0
      %268 = vmatpush1.bf16.msra.mxu0 0
      %269 = vmatprep.subr.bf16.mxu0 0
      %270 = vmatpush1.bf16.msra.mxu0 0
      %271 = vmatprep.subr.bf16.mxu0 0
      %272 = vmatpush1.bf16.msra.mxu0 0
      %273 = vmatprep.subr.bf16.mxu0 0
      %274 = vmatpush1.bf16.msra.mxu0 0
      %275 = vmatprep.subr.bf16.mxu0 0
      %276 = vmatpush1.bf16.msra.mxu0 0
      %277 = vmatprep.subr.bf16.mxu0 0
      %278 = vmatpush1.bf16.msra.mxu0 0
      %279 = vmatprep.subr.bf16.mxu0 0
      %280 = vmatpush1.bf16.msra.mxu0 0
      %281 = vmatprep.subr.bf16.mxu0 0
      %282 = vmatpush1.bf16.msra.mxu0 0
      %283 = vmatprep.subr.bf16.mxu0 0
      %284 = vmatpush1.bf16.msra.mxu0 0
      %285 = vmatprep.subr.bf16.mxu0 0
      %286 = vmatpush1.bf16.msra.mxu0 0
      %287 = vmatprep.subr.bf16.mxu0 0
      %288 = vmatpush1.bf16.msra.mxu0 0
      %289 = vmatprep.subr.bf16.mxu0 0
      %290 = vmatpush1.bf16.msra.mxu0 0
      %291 = vmatprep.mubr.bf16.mxu0 0
      %292 = vmatmul.mubr.bf16.gmra.mrb[0].mxu0 %v254
      %v293 = vpop.f32.mrb[0].mxu0
      %v294 = vadd.f32 0.0, %v293
      %v295 = vpop.f32.mrb[0].mxu0
      %v296 = vpop.f32.mrb[0].mxu0
      %v297 = vadd.f32 0.0, %v296
      %v298 = vpop.f32.mrb[0].mxu0
      %299 = vmatprep.mubr.bf16.mxu0 0
      %300 = vmatmul.mubr.bf16.gmra.mrb[0].mxu0 %v257
      %v301 = vpop.f32.mrb[0].mxu0
      %v302 = vadd.f32 0.0, %v301
      %v303 = vpop.f32.mrb[0].mxu0
      %v304 = vpop.f32.mrb[0].mxu0
      %v305 = vadd.f32 0.0, %v304
      %v306 = vpop.f32.mrb[0].mxu0
      %307 = vdwg.mxu0
      %v308 = vadd.f32 %v202, %v294
      %v309 = vadd.f32 %v203, %v297
      %v310 = vadd.f32 %v204, %v302
      %v311 = vadd.f32 %v205, %v305
      %vm312 = vcmask 130048
      %313 = vst.msk [vmem:[#allocation2] sm:$0xff] %vm312, %v308
      %314 = vst.msk [vmem:[#allocation2 + $0x8] sm:$0xff] %vm312, %v309
      %315 = vst.msk [vmem:[#allocation2 + $0x10] sm:$0xff] %vm312, %v310
      %316 = vst.msk [vmem:[#allocation2 + $0x18] sm:$0xff] %vm312, %v311
      // Predicated region
      $region33: #{recurrent_gcn_forward.1} parent=27 // pred_check
        %p317 = pneg %p193
      $region34: #{recurrent_gcn_forward.1} parent=27 // pred_check_branch
        %319 = sbr.rel (%p317) target = $region36
      $region35: #{recurrent_gcn_forward.1} parent=27 // pred_region
        %v320 = vld [vmem:[#allocation2] sm:$0xff]
        %v321 = vld [vmem:[#allocation2 + $0x8] sm:$0xff]
        %v322 = vld [vmem:[#allocation2 + $0x10] sm:$0xff]
        %v323 = vld [vmem:[#allocation2 + $0x18] sm:$0xff]
        %v324 = vmin.f32 %v320, 0.0
        %v325 = vmin.f32 %v321, 0.0
        %v326 = vmin.f32 %v322, 0.0
        %v327 = vmin.f32 %v323, 0.0
        %v328 = vmul.f32 %v324, 1.442695
        %v329 = vpow.pop %v328
        %v330 = vmul.f32 %v325, 1.442695
        %v331 = vpow.pop %v330
        %v332 = vmul.f32 %v326, 1.442695
        %v333 = vpow.pop %v332
        %v334 = vmul.f32 %v327, 1.442695
        %v335 = vpow.pop %v334
        %v336 = vsub.f32 %v329, 1.0
        %v337 = vsub.f32 %v331, 1.0
        %v338 = vsub.f32 %v333, 1.0
        %v339 = vsub.f32 %v335, 1.0
        %v340 = vmul.f32 %v336, 1.6732632
        %v341 = vmul.f32 %v337, 1.6732632
        %v342 = vmul.f32 %v338, 1.6732632
        %v343 = vmul.f32 %v339, 1.6732632
        %vm344 = vcmp.gt.f32.partialorder %v320, 0.0
        %vm345 = vcmp.gt.f32.partialorder %v321, 0.0
        %vm346 = vcmp.gt.f32.partialorder %v322, 0.0
        %vm347 = vcmp.gt.f32.partialorder %v323, 0.0
        %v348 = vsel %vm344, %v320, %v340
        %v349 = vsel %vm345, %v321, %v341
        %v350 = vsel %vm346, %v322, %v342
        %v351 = vsel %vm347, %v323, %v343
        %v352 = vmul.f32 %v348, 1.050701
        %v353 = vmul.f32 %v349, 1.050701
        %v354 = vmul.f32 %v350, 1.050701
        %v355 = vmul.f32 %v351, 1.050701
        %356 = vst.msk [vmem:[%s190] sm:$0xff] %vm312, %v352
        %357 = vst.msk [vmem:[%s190 + $0x8] sm:$0xff] %vm312, %v353
        %358 = vst.msk [vmem:[%s190 + $0x10] sm:$0xff] %vm312, %v354
        %359 = vst.msk [vmem:[%s190 + $0x18] sm:$0xff] %vm312, %v355
      $region36: #{recurrent_gcn_forward.1} parent=27 // pred_fallthru
        _
      %s360 = smul.u32 4, %s17
      %p361 = scmp.lt.s32.totalorder %s360, 7
      %s362 = scalar_select %p361, %s360, 7
      %s363 = smul.addr %s362, 8
      %s364 = scalar_lea.vmem %s2, %s363
      // Predicated region
      $region37: #{recurrent_gcn_forward.1} parent=27 // pred_check
        %p365 = pneg %p97
      $region38: #{recurrent_gcn_forward.1} parent=27 // pred_check_branch
        %367 = sbr.rel (%p365) target = $region40
      $region39: #{recurrent_gcn_forward.1} parent=27 // pred_region
        %s368 = smul.u32 4, %s17
      $region40: #{recurrent_gcn_forward.1} parent=27 // pred_fallthru
        _
    $region28: #{recurrent_gcn_forward.1} parent=5 // pred_fallthru
      _
    %p369 = scmp.le.s32.totalorder 2, %s8
    // Predicated region
    $region41: #{recurrent_gcn_forward.1} parent=5 // pred_check
      %p370 = pneg %p369
    $region42: #{recurrent_gcn_forward.1} parent=5 // pred_check_branch
      %372 = sbr.rel (%p370) target = $region44
    $region43: #{recurrent_gcn_forward.1} parent=5 // pred_region
      %s373 = ssub.s32 %s8, 2
      // Predicated region
      $region45: #{recurrent_gcn_forward.1} parent=43 // pred_check
        %p374 = pneg %p103
      $region46: #{recurrent_gcn_forward.1} parent=43 // pred_check_branch
        %376 = sbr.rel (%p374) target = $region48
      $region47: #{recurrent_gcn_forward.1} parent=43 // pred_region
        %s377 = smul.u32 4, %s19
        %p378 = scmp.lt.s32.totalorder %s377, 7
        %s379 = scalar_select %p378, %s377, 7
        %s380 = smul.addr %s379, 8
        %s381 = scalar_lea.vmem %s2, %s380
      $region48: #{recurrent_gcn_forward.1} parent=43 // pred_fallthru
        _
    $region44: #{recurrent_gcn_forward.1} parent=5 // pred_fallthru
      _
  $region6: #{recurrent_gcn_forward.1} parent=0 // loop_footer
    %s12 = sadd.s32 1, %s8
  $region7: #{recurrent_gcn_forward.1} parent=0 // loop_footer_branch
    %7 = sbr.rel target = $region3
  $region8: #{recurrent_gcn_forward.1} parent=0 // loop_exit
    _

</llo_original>
